<compile_context>
chip_gen: v6e
topology: v6e:2x2x1
jax: 0.10.0
libtpu: 0.0.40
codegen_flags: <defaults>
</compile_context>

<pallas_src>
import jax
import jax.numpy as jnp
from jax.experimental import pallas as pl
from jax.experimental.pallas import tpu as pltpu

EPS = 1e-5


def _round_up(n, m):
    return ((n + m - 1) // m) * m


def _cdiv(a, b):
    return (a + b - 1) // b


def _ln_linear_kernel(x_ref, w_ref, cs_ref, b_ref, o_ref, mean_sc, rstd_sc):
    # x_ref : (TR, H)   activation row tile (native dtype, fed to MXU as-is)
    # w_ref : (H, TN)   gamma-folded weight tile
    # cs_ref: (1, TN)   f32 column sums of the folded weight
    # b_ref : (1, TN)   f32 folded bias  (beta @ W + b)
    # o_ref : (TR, TN)  output tile
    # mean_sc / rstd_sc: (TR, 1) f32 scratch, persist across the j sweep
    j = pl.program_id(1)

    @pl.when(j == 0)
    def _():
        xf = x_ref[...].astype(jnp.float32)
        inv_h = jnp.float32(1.0 / xf.shape[-1])
        mean = jnp.sum(xf, axis=-1, keepdims=True) * inv_h
        ctr = xf - mean
        var = jnp.sum(ctr * ctr, axis=-1, keepdims=True) * inv_h  # 2-pass, >= 0
        mean_sc[...] = mean
        rstd_sc[...] = jax.lax.rsqrt(var + EPS)

    # MXU matmul on the raw x tile (native dtype), f32 accumulation.
    acc = jnp.dot(x_ref[...], w_ref[...], preferred_element_type=jnp.float32)

    rstd = rstd_sc[...]                       # (TR, 1)
    shift = rstd * mean_sc[...]               # (TR, 1)
    out = (rstd * acc
           - shift * cs_ref[...].astype(jnp.float32)
           + b_ref[...].astype(jnp.float32))
    o_ref[...] = out.astype(o_ref.dtype)


def prepare_params(gamma, beta, w_t, b):
    """One-time fold of the LayerNorm affine into the Linear parameters.

    Call this at parameter-setup time (NOT per forward) so the hot path never
    rewrites the [H, Hout] weight in HBM.
      w_t: [H, Hout]  (torch nn.Linear weight (Hout, H), transposed)
    Returns (w_f [H,Hout], colsum [1,Hout] f32, b_f [1,Hout] f32).
    """
    w_f = gamma[:, None].astype(w_t.dtype) * w_t
    colsum = jnp.sum(w_f.astype(jnp.float32), axis=0, keepdims=True)
    b_f = (beta.astype(jnp.float32) @ w_t.astype(jnp.float32)
           + b.astype(jnp.float32))[None, :]
    return w_f, colsum, b_f


def _vmem_budget_bytes():
    try:
        cap = int(pltpu.get_tpu_info().vmem_capacity_bytes)
    except Exception:
        cap = 0
    if cap <= 0:
        cap = 64 << 20                      # conservative (v7x-sized) fallback
    # ~100 MiB on the 128 MiB generations (v5e/v6e), ~48 MiB on v7x (64 MiB).
    return max(min(cap * 3 // 4, 100 << 20), 32 << 20)


def _pick_tiles(rows, H, Hout, x_isize, w_isize, out_isize, budget):
    n_tile = Hout if Hout <= 256 else 256            # full dim or 128-multiple
    row_tile = 512 if x_isize <= 2 else 256          # big row tiles => weight reuse
    row_tile = min(row_tile, _round_up(rows, 8))
    if rows <= 8:
        row_tile = rows

    def est(rt, nt):
        return (2 * rt * H * x_isize          # x tile (double-buffered)
                + 2 * H * nt * w_isize        # weight tile (double-buffered)
                + 8 * nt * 4                  # colsum + bias tiles (f32)
                + 2 * rt * nt * out_isize     # output tile (double-buffered)
                + rt * H * 4                  # f32 stats temporaries (j == 0)
                + 2 * rt * nt * 4             # f32 acc + epilogue temporaries
                + 2 * rt * 4                  # mean / rstd scratch
                + (2 << 20))                  # headroom

    while est(row_tile, n_tile) > budget:
        if row_tile > 64:
            row_tile = max(64, row_tile // 2)
        elif n_tile > 128:
            n_tile = max(128, n_tile // 2)
        else:
            break
    # TODO(synk): for very large H on v7x (64 MiB VMEM), add a K grid axis
    # ("arbitrary") with an f32 accumulator instead of shrinking row_tile.

    # Megacore: make sure the row axis has >= 2 blocks so v7x's 2 TCs both work.
    if rows > 8 and _cdiv(rows, row_tile) < 2:
        row_tile = max(8, _round_up(_cdiv(rows, 2), 8))
    return row_tile, n_tile


def no_residual_forward(x, w_f, colsum, b_f):
    """forward(x) = Linear(LayerNorm(x)); no residual connection.

    x:      [B, S, H]   activations (matmul runs in x/w's native dtype)
    w_f:    [H, Hout]   gamma-folded weight   (from prepare_params)
    colsum: [1, Hout]   f32 column sums of w_f
    b_f:    [1, Hout]   f32 folded bias (beta @ W + b)
    """
    B, S, H = x.shape
    Hout = w_f.shape[1]
    rows = B * S
    x2 = x.reshape(rows, H)                  # contiguous reshape; no pad copies

    budget = _vmem_budget_bytes()
    row_tile, n_tile = _pick_tiles(
        rows, H, Hout,
        jnp.dtype(x.dtype).itemsize,
        jnp.dtype(w_f.dtype).itemsize,
        jnp.dtype(x.dtype).itemsize,
        budget)

    grid = (_cdiv(rows, row_tile), _cdiv(Hout, n_tile))

    out = pl.pallas_call(
        _ln_linear_kernel,
        out_shape=jax.ShapeDtypeStruct((rows, Hout), x.dtype),
        grid_spec=pltpu.PrefetchScalarGridSpec(
            num_scalar_prefetch=0,
            grid=grid,
            in_specs=[
                # x tile's block index is constant along j -> stays resident.
                pl.BlockSpec((row_tile, H), lambda i, j: (i, 0)),
                pl.BlockSpec((H, n_tile), lambda i, j: (0, j)),
                pl.BlockSpec((1, n_tile), lambda i, j: (0, j)),
                pl.BlockSpec((1, n_tile), lambda i, j: (0, j)),
            ],
            out_specs=pl.BlockSpec((row_tile, n_tile), lambda i, j: (i, j)),
            scratch_shapes=[
                pltpu.VMEM((row_tile, 1), jnp.float32),   # mean cache
                pltpu.VMEM((row_tile, 1), jnp.float32),   # rstd cache
            ],
        ),
        compiler_params=pltpu.CompilerParams(
            # Stats cached across the j sweep -> j is "arbitrary";
            # rows stay "parallel" for megacore sharding on v7x.
            dimension_semantics=("parallel", "arbitrary"),
            vmem_limit_bytes=budget,
        ),
    )(x2, w_f, colsum, b_f)

    return out.reshape(B, S, Hout)


def reference(x, gamma, beta, w_t, b):
    xf = x.astype(jnp.float32)
    mean = jnp.mean(xf, axis=-1, keepdims=True)
    var = jnp.mean((xf - mean) ** 2, axis=-1, keepdims=True)
    xn = (xf - mean) * jax.lax.rsqrt(var + EPS)
    y = xn * gamma + beta
    return (y @ w_t.astype(jnp.float32) + b).astype(x.dtype)


if __name__ == "__main__":
    key = jax.random.PRNGKey(0)
    B, S, H, Hout = 2, 8, 32, 32

    kx, kg, kb, kw, kbias = jax.random.split(key, 5)
    x = jax.random.normal(kx, (B, S, H), dtype=jnp.float32)
    # Deterministic synthetic parameters (not a checkpoint load).
    gamma = 1.0 + 0.1 * jax.random.normal(kg, (H,), dtype=jnp.float32)
    beta = 0.1 * jax.random.normal(kb, (H,), dtype=jnp.float32)
    # torch nn.Linear stores W as (Hout, H); we pass its transpose (H, Hout).
    w_t = (jax.random.normal(kw, (Hout, H), dtype=jnp.float32) * (H ** -0.5)).T
    bias = 0.1 * jax.random.normal(kbias, (Hout,), dtype=jnp.float32)

    # One-time parameter fold (outside the per-call hot path).
    w_f, colsum, b_f = prepare_params(gamma, beta, w_t, bias)

    out = no_residual_forward(x, w_f, colsum, b_f)
    out = jax.block_until_ready(out)

    ref = reference(x, gamma, beta, w_t, bias)
    assert out.shape == (B, S, Hout)
    assert jnp.allclose(out, ref, atol=2e-4, rtol=2e-4), "mismatch vs reference"
    print("KERNEL_OK")
</pallas_src>

<mosaic_0001>
module attributes {stable_mosaic.version = 11 : i64} {
  func.func @_ln_linear_kernel(%arg0: i32, %arg1: i32, %arg2: memref<8x32xf32, #tpu.memory_space<vmem>>, %arg3: memref<32x32xf32, #tpu.memory_space<vmem>>, %arg4: memref<1x32xf32, #tpu.memory_space<vmem>>, %arg5: memref<1x32xf32, #tpu.memory_space<vmem>>, %arg6: memref<8x32xf32, #tpu.memory_space<vmem>>, %arg7: memref<8x1xf32, #tpu.memory_space<vmem>>, %arg8: memref<8x1xf32, #tpu.memory_space<vmem>>) attributes {dimension_semantics = [#tpu.dimension_semantics<parallel>, #tpu.dimension_semantics<arbitrary>], iteration_bounds = array<i64: 2, 1>, scalar_prefetch = 0 : i64, scratch_operands = 2 : i64, tpu.core_type = #tpu.core_type<tc>, window_params = [{transform_indices = @transform_0, window_bounds = array<i64: 8, 32>}, {transform_indices = @transform_1, window_bounds = array<i64: 32, 32>}, {transform_indices = @transform_2, window_bounds = array<i64: 1, 32>}, {transform_indices = @transform_3, window_bounds = array<i64: 1, 32>}, {transform_indices = @transform_4, window_bounds = array<i64: 8, 32>}]} {
    %c0_i32 = arith.constant 0 : i32
    %0 = arith.cmpi eq, %arg1, %c0_i32 : i32
    %1 = arith.extui %0 : i1 to i32
    %c0_i32_0 = arith.constant 0 : i32
    %2 = arith.cmpi ne, %1, %c0_i32_0 : i32
    scf.if %2 {
      %c0_14 = arith.constant 0 : index
      %c0_15 = arith.constant 0 : index
      %20 = vector.load %arg2[%c0_14, %c0_15] : memref<8x32xf32, #tpu.memory_space<vmem>>, vector<8x32xf32>
      %cst_16 = arith.constant dense<0.000000e+00> : vector<8xf32>
      %21 = vector.multi_reduction <add>, %20, %cst_16 [1] : vector<8x32xf32> to vector<8xf32>
      %22 = vector.shape_cast %21 : vector<8xf32> to vector<8x1xf32>
      %cst_17 = arith.constant 3.125000e-02 : f32
      %23 = vector.broadcast %cst_17 : f32 to vector<8x1xf32>
      %24 = arith.mulf %22, %23 : vector<8x1xf32>
      %25 = vector.broadcast %24 : vector<8x1xf32> to vector<8x32xf32>
      %26 = arith.subf %20, %25 : vector<8x32xf32>
      %27 = arith.mulf %26, %26 : vector<8x32xf32>
      %cst_18 = arith.constant dense<0.000000e+00> : vector<8xf32>
      %28 = vector.multi_reduction <add>, %27, %cst_18 [1] : vector<8x32xf32> to vector<8xf32>
      %29 = vector.shape_cast %28 : vector<8xf32> to vector<8x1xf32>
      %cst_19 = arith.constant 3.125000e-02 : f32
      %30 = vector.broadcast %cst_19 : f32 to vector<8x1xf32>
      %31 = arith.mulf %29, %30 : vector<8x1xf32>
      %c0_20 = arith.constant 0 : index
      %c0_21 = arith.constant 0 : index
      %32 = vector.load %arg7[%c0_20, %c0_21] : memref<8x1xf32, #tpu.memory_space<vmem>>, vector<8x1xf32>
      tpu.vector_store %arg7[%c0_20, %c0_21], %24 {strides = array<i32>} : memref<8x1xf32, #tpu.memory_space<vmem>>, vector<8x1xf32>,
      %cst_22 = arith.constant 9.99999974E-6 : f32
      %33 = vector.broadcast %cst_22 : f32 to vector<8x1xf32>
      %34 = arith.addf %31, %33 : vector<8x1xf32>
      %35 = math.rsqrt %34 : vector<8x1xf32>
      %c0_23 = arith.constant 0 : index
      %c0_24 = arith.constant 0 : index
      %36 = vector.load %arg8[%c0_23, %c0_24] : memref<8x1xf32, #tpu.memory_space<vmem>>, vector<8x1xf32>
      tpu.vector_store %arg8[%c0_23, %c0_24], %35 {strides = array<i32>} : memref<8x1xf32, #tpu.memory_space<vmem>>, vector<8x1xf32>,
    } else {
    }
    %c0 = arith.constant 0 : index
    %c0_1 = arith.constant 0 : index
    %3 = vector.load %arg2[%c0, %c0_1] : memref<8x32xf32, #tpu.memory_space<vmem>>, vector<8x32xf32>
    %c0_2 = arith.constant 0 : index
    %c0_3 = arith.constant 0 : index
    %4 = vector.load %arg3[%c0_2, %c0_3] : memref<32x32xf32, #tpu.memory_space<vmem>>, vector<32x32xf32>
    %cst = arith.constant dense<0.000000e+00> : vector<8x32xf32>
    %5 = tpu.matmul %3, %4, %cst {dimension_numbers = #tpu.dot_dimension_numbers<[1], [0], [0], [1], [0, 0, 1, 1], [], []>} : vector<8x32xf32>, vector<32x32xf32>, vector<8x32xf32> -> vector<8x32xf32>
    %c0_4 = arith.constant 0 : index
    %c0_5 = arith.constant 0 : index
    %6 = vector.load %arg8[%c0_4, %c0_5] : memref<8x1xf32, #tpu.memory_space<vmem>>, vector<8x1xf32>
    %c0_6 = arith.constant 0 : index
    %c0_7 = arith.constant 0 : index
    %7 = vector.load %arg7[%c0_6, %c0_7] : memref<8x1xf32, #tpu.memory_space<vmem>>, vector<8x1xf32>
    %8 = arith.mulf %6, %7 : vector<8x1xf32>
    %9 = vector.broadcast %6 : vector<8x1xf32> to vector<8x32xf32>
    %10 = arith.mulf %9, %5 : vector<8x32xf32>
    %c0_8 = arith.constant 0 : index
    %c0_9 = arith.constant 0 : index
    %11 = vector.load %arg4[%c0_8, %c0_9] : memref<1x32xf32, #tpu.memory_space<vmem>>, vector<1x32xf32>
    %12 = vector.broadcast %8 : vector<8x1xf32> to vector<8x32xf32>
    %13 = vector.broadcast %11 : vector<1x32xf32> to vector<8x32xf32>
    %14 = arith.mulf %12, %13 : vector<8x32xf32>
    %15 = arith.subf %10, %14 : vector<8x32xf32>
    %c0_10 = arith.constant 0 : index
    %c0_11 = arith.constant 0 : index
    %16 = vector.load %arg5[%c0_10, %c0_11] : memref<1x32xf32, #tpu.memory_space<vmem>>, vector<1x32xf32>
    %17 = vector.broadcast %16 : vector<1x32xf32> to vector<8x32xf32>
    %18 = arith.addf %15, %17 : vector<8x32xf32>
    %c0_12 = arith.constant 0 : index
    %c0_13 = arith.constant 0 : index
    %19 = vector.load %arg6[%c0_12, %c0_13] : memref<8x32xf32, #tpu.memory_space<vmem>>, vector<8x32xf32>
    tpu.vector_store %arg6[%c0_12, %c0_13], %18 {strides = array<i32>} : memref<8x32xf32, #tpu.memory_space<vmem>>, vector<8x32xf32>,
    return
  }
  func.func @transform_0(%arg0: i32, %arg1: i32) -> (i32, i32) {
    %c0_i32 = arith.constant 0 : i32
    %c0_i32_0 = arith.constant 0 : i32
    return %arg0, %c0_i32 : i32, i32
  }
  func.func @transform_1(%arg0: i32, %arg1: i32) -> (i32, i32) {
    %c0_i32 = arith.constant 0 : i32
    %c0_i32_0 = arith.constant 0 : i32
    return %c0_i32, %arg1 : i32, i32
  }
  func.func @transform_2(%arg0: i32, %arg1: i32) -> (i32, i32) {
    %c0_i32 = arith.constant 0 : i32
    %c0_i32_0 = arith.constant 0 : i32
    return %c0_i32, %arg1 : i32, i32
  }
  func.func @transform_3(%arg0: i32, %arg1: i32) -> (i32, i32) {
    %c0_i32 = arith.constant 0 : i32
    %c0_i32_0 = arith.constant 0 : i32
    return %c0_i32, %arg1 : i32, i32
  }
  func.func @transform_4(%arg0: i32, %arg1: i32) -> (i32, i32) {
    %c0_i32 = arith.constant 0 : i32
    return %arg0, %arg1 : i32, i32
  }
}

</mosaic_0001>

<llo_original>
// kernel: tpu_custom_call.1
$region0: #{tpu_custom_call.1}
  #allocation0 [shape = 'u32[]', space=smem, size = 0x4, offset = 0x4, fixed_abs, tag = 'smem constant byte address 0x4 - core index']
  #allocation1 [shape = 'u32[144,128]{1,0:T(1,128)}', space=vmem, size = 0x12000, scoped, tag = 'internal scratch']
  #allocation2 [shape = 'f32[8,1]{1,0:T(8,128)}', space=vmem, size = 0x1000, scoped, tag = 'scratch operand']
  #allocation3 [shape = 'f32[8,1]{1,0:T(8,128)}', space=vmem, size = 0x1000, scoped, tag = 'scratch operand']
  %s0 = inlined_call_operand.hbm [shape: f32[16,32], index: 0, kind: input, shape index: {}]
  %s1 = inlined_call_operand.hbm [shape: f32[32,32], index: 1, kind: input, shape index: {}]
  %s2 = inlined_call_operand.vmem [shape: f32[1,32], index: 2, kind: input, shape index: {}]
  %s3 = inlined_call_operand.vmem [shape: f32[1,32], index: 3, kind: input, shape index: {}]
  %s4 = inlined_call_operand.hbm [shape: f32[16,32], index: 4, kind: output, shape index: {}]
  %s5 = sld [smem:[#allocation0]]
  $region61: #{tpu_custom_call.1} parent=0
    _
  %s7 = ssub.s32 1, %s5
  %s8 = scalar_select 0, %s7, %s5
  $region1: #{tpu_custom_call.1} parent=0
    #allocation4 [shape = 'u8[8192]{0}', space=vmem, size = 0x2000, scoped, tag = 'input window, operand 0']
    #allocation5 [shape = 's32[2]{0}', space=sflag, size = 0x8, scoped, tag = 'scoped memory for tpu_custom_call.1']
    #allocation6 [shape = 's32[2]{0}', space=sflag, size = 0x8, scoped, tag = 'scoped memory for tpu_custom_call.1']
    #allocation7 [shape = 'u8[16384]{0}', space=vmem, size = 0x4000, scoped, tag = 'input window, operand 1, single buffered']
    #allocation8 [shape = 's32[1]{0}', space=sflag, size = 0x4, scoped, tag = 'scoped memory for tpu_custom_call.1']
    #allocation9 [shape = 'u8[8192]{0}', space=vmem, size = 0x2000, scoped, tag = 'output window, operand 0']
    %9 = vsyncpa [#allocation5], 0
    %s10 = scalar_lea.sflag [#allocation5], 1
    %11 = vsyncpa %s10, 0
    %12 = vsyncpa [#allocation8], 0
    %13 = vsyncpa [#allocation6], 0
    %s14 = scalar_lea.sflag [#allocation6], 1
    %15 = vsyncpa %s14, 0
    loop: start=0, step=1, limit=4
    $region2: #{tpu_custom_call.1} parent=1 // loop_pre_header
      _
    $region3: #{tpu_custom_call.1} parent=1 // loop_header
      %s17 = sphi 0, %s21
      %p18 = scmp.ge.s32.totalorder %s17, 4
      %s24 = sphi 0, %s36
      %s25 = sphi 0, %s32
      %s26 = sphi 0, %s24
      %s27 = sphi 0, %s25
      %s28 = sphi 0, %s26
      %s29 = sphi 0, %s27
      %s39 = sphi 0, %s41
      %s42 = sphi 0, %s39
      %s43 = sphi 0, %s42
      %s59 = sphi 0, %s43
      %s65 = sphi 0, %s67
      %s68 = sphi 0, %s65
      %s69 = sphi 0, %s68
      %s85 = sphi 0, %s69
      %s91 = sphi 0, %s93
      %s94 = sphi 0, %s91
      %s95 = sphi 0, %s94
      %s111 = sphi 0, %s95
      %s117 = sphi 0, %s119
      %s120 = sphi 0, %s117
      %s121 = sphi 0, %s120
      %s137 = sphi 0, %s121
      %s145 = sphi 0, %s147
      %s148 = sphi 0, %s145
      %s149 = sphi 0, %s148
      %s165 = sphi 0, %s149
    $region4: #{tpu_custom_call.1} parent=1 // loop_header_branch
      %20 = sbr.rel (%p18) target = $region8
    $region5: #{tpu_custom_call.1} parent=1 // loop_body
      %s22 = ssub.s32 %s17, 1
      %s23 = ssub.s32 %s17, 2
      %s30 = sadd.s32 1, %s25
      %p31 = scmp.ge.s32.totalorder %s30, 1
      %s32 = scalar_select %p31, 0, %s30
      %s33 = sadd.s32 1, %s24
      %s34 = scalar_select %p31, %s33, %s24
      %p35 = scmp.ge.s32.totalorder %s34, 2
      %s36 = scalar_select %p35, 0, %s34
      %s37 = ssub.s32 %s24, %s36
      %p38 = scmp.eq.s32.totalorder %s37, 0
      %s40 = sadd.s32 %s39, 1
      %s41 = scalar_select %p38, %s39, %s40
      %p44 = pneg %p38
      %p45 = scmp.eq.s32.totalorder %s17, 1
      %p46 = por %p44, %p45
      %p47 = scmp.ne.s32.totalorder %s39, %s42
      %p48 = scmp.eq.s32.totalorder %s17, 0
      %p49 = por %p47, %p48
      %p50 = scmp.ne.s32.totalorder %s39, %s42
      %p51 = scmp.eq.s32.totalorder %s22, 1
      %p52 = por %p50, %p51
      %p53 = scmp.ne.s32.totalorder %s42, %s43
      %p54 = scmp.eq.s32.totalorder %s22, 0
      %p55 = por %p53, %p54
      %p56 = scmp.ne.s32.totalorder %s42, %s43
      %p57 = scmp.eq.s32.totalorder %s23, 1
      %p58 = por %p56, %p57
      %p60 = scmp.ne.s32.totalorder %s43, %s59
      %p61 = scmp.eq.s32.totalorder %s23, 0
      %p62 = por %p60, %p61
      %s63 = ssub.s32 %s25, %s32
      %p64 = scmp.eq.s32.totalorder %s63, 0
      %s66 = sadd.s32 %s65, 1
      %s67 = scalar_select %p64, %s65, %s66
      %p70 = pneg %p64
      %p71 = scmp.eq.s32.totalorder %s17, 1
      %p72 = por %p70, %p71
      %p73 = scmp.ne.s32.totalorder %s65, %s68
      %p74 = scmp.eq.s32.totalorder %s17, 0
      %p75 = por %p73, %p74
      %p76 = scmp.ne.s32.totalorder %s65, %s68
      %p77 = scmp.eq.s32.totalorder %s22, 1
      %p78 = por %p76, %p77
      %p79 = scmp.ne.s32.totalorder %s68, %s69
      %p80 = scmp.eq.s32.totalorder %s22, 0
      %p81 = por %p79, %p80
      %p82 = scmp.ne.s32.totalorder %s68, %s69
      %p83 = scmp.eq.s32.totalorder %s23, 1
      %p84 = por %p82, %p83
      %p86 = scmp.ne.s32.totalorder %s69, %s85
      %p87 = scmp.eq.s32.totalorder %s23, 0
      %p88 = por %p86, %p87
      %s89 = ssub.s32 %s25, %s32
      %p90 = scmp.eq.s32.totalorder %s89, 0
      %s92 = sadd.s32 %s91, 1
      %s93 = scalar_select %p90, %s91, %s92
      %p96 = pneg %p90
      %p97 = scmp.eq.s32.totalorder %s17, 1
      %p98 = por %p96, %p97
      %p99 = scmp.ne.s32.totalorder %s91, %s94
      %p100 = scmp.eq.s32.totalorder %s17, 0
      %p101 = por %p99, %p100
      %p102 = scmp.ne.s32.totalorder %s91, %s94
      %p103 = scmp.eq.s32.totalorder %s22, 1
      %p104 = por %p102, %p103
      %p105 = scmp.ne.s32.totalorder %s94, %s95
      %p106 = scmp.eq.s32.totalorder %s22, 0
      %p107 = por %p105, %p106
      %p108 = scmp.ne.s32.totalorder %s94, %s95
      %p109 = scmp.eq.s32.totalorder %s23, 1
      %p110 = por %p108, %p109
      %p112 = scmp.ne.s32.totalorder %s95, %s111
      %p113 = scmp.eq.s32.totalorder %s23, 0
      %p114 = por %p112, %p113
      %s115 = ssub.s32 %s25, %s32
      %p116 = scmp.eq.s32.totalorder %s115, 0
      %s118 = sadd.s32 %s117, 1
      %s119 = scalar_select %p116, %s117, %s118
      %p122 = pneg %p116
      %p123 = scmp.eq.s32.totalorder %s17, 1
      %p124 = por %p122, %p123
      %p125 = scmp.ne.s32.totalorder %s117, %s120
      %p126 = scmp.eq.s32.totalorder %s17, 0
      %p127 = por %p125, %p126
      %p128 = scmp.ne.s32.totalorder %s117, %s120
      %p129 = scmp.eq.s32.totalorder %s22, 1
      %p130 = por %p128, %p129
      %p131 = scmp.ne.s32.totalorder %s120, %s121
      %p132 = scmp.eq.s32.totalorder %s22, 0
      %p133 = por %p131, %p132
      %p134 = scmp.ne.s32.totalorder %s120, %s121
      %p135 = scmp.eq.s32.totalorder %s23, 1
      %p136 = por %p134, %p135
      %p138 = scmp.ne.s32.totalorder %s121, %s137
      %p139 = scmp.eq.s32.totalorder %s23, 0
      %p140 = por %p138, %p139
      %s141 = ssub.s32 %s24, %s36
      %s142 = ssub.s32 %s25, %s32
      %s143 = sor.u32 %s141, %s142
      %p144 = scmp.eq.s32.totalorder %s143, 0
      %s146 = sadd.s32 %s145, 1
      %s147 = scalar_select %p144, %s145, %s146
      %p150 = pneg %p144
      %p151 = scmp.eq.s32.totalorder %s17, 1
      %p152 = por %p150, %p151
      %p153 = scmp.ne.s32.totalorder %s145, %s148
      %p154 = scmp.eq.s32.totalorder %s17, 0
      %p155 = por %p153, %p154
      %p156 = scmp.ne.s32.totalorder %s145, %s148
      %p157 = scmp.eq.s32.totalorder %s22, 1
      %p158 = por %p156, %p157
      %p159 = scmp.ne.s32.totalorder %s148, %s149
      %p160 = scmp.eq.s32.totalorder %s22, 0
      %p161 = por %p159, %p160
      %p162 = scmp.ne.s32.totalorder %s148, %s149
      %p163 = scmp.eq.s32.totalorder %s23, 1
      %p164 = por %p162, %p163
      %p166 = scmp.ne.s32.totalorder %s149, %s165
      %p167 = scmp.eq.s32.totalorder %s23, 0
      %p168 = por %p166, %p167
      %p169 = scmp.le.s32.totalorder 1, %s17
      %p170 = scmp.lt.s32.totalorder %s17, 3
      %p171 = pnand %p169, %p170
      %p172 = pneg %p171
      // Predicated region
      $region9: #{tpu_custom_call.1} parent=5 // pred_check
        _
      $region10: #{tpu_custom_call.1} parent=5 // pred_check_branch
        %174 = sbr.rel (%p171) target = $region12
      $region11: #{tpu_custom_call.1} parent=5 // pred_region
        %s175 = ssub.s32 %s17, 1
        // Predicated region
        $region13: #{tpu_custom_call.1} parent=11 // pred_check
          %p176 = pneg %p81
        $region14: #{tpu_custom_call.1} parent=11 // pred_check_branch
          %178 = sbr.rel (%p176) target = $region16
        $region15: #{tpu_custom_call.1} parent=11 // pred_region
          %s180 = ssub.s32 512, 512
          %181 = vsyncadd [#allocation8], %s180
          %s182 = smul.addr %s27, 128
          %s183 = scalar_lea.hbm %s1, %s182
          %s184 = sshll.u32 [#allocation7], 4
          %s185 = int_to_ptr.vmem [resolvable:$true] %s184
          %190 = dma.hbm_to_vmem [thread:$0]  %s183, 512, %s185, [#allocation8], 128, 128, 8
        $region16: #{tpu_custom_call.1} parent=11 // pred_fallthru
          _
        // Predicated region
        $region17: #{tpu_custom_call.1} parent=11 // pred_check
          %p191 = pneg %p107
        $region18: #{tpu_custom_call.1} parent=11 // pred_check_branch
          %193 = sbr.rel (%p191) target = $region20
        $region19: #{tpu_custom_call.1} parent=11 // pred_region
          %p194 = scmp.lt.s32.totalorder %s27, 0
          %s195 = scalar_select %p194, %s27, 0
          %s196 = scalar_lea.vmem %s2, %s195
        $region20: #{tpu_custom_call.1} parent=11 // pred_fallthru
          _
        // Predicated region
        $region21: #{tpu_custom_call.1} parent=11 // pred_check
          %p197 = pneg %p133
        $region22: #{tpu_custom_call.1} parent=11 // pred_check_branch
          %199 = sbr.rel (%p197) target = $region24
        $region23: #{tpu_custom_call.1} parent=11 // pred_region
          %p200 = scmp.lt.s32.totalorder %s27, 0
          %s201 = scalar_select %p200, %s27, 0
          %s202 = scalar_lea.vmem %s3, %s201
        $region24: #{tpu_custom_call.1} parent=11 // pred_fallthru
          _
      $region12: #{tpu_custom_call.1} parent=5 // pred_fallthru
        _
      %p203 = scmp.lt.s32.totalorder %s17, 2
      // Predicated region
      $region25: #{tpu_custom_call.1} parent=5 // pred_check
        %p204 = pneg %p203
      $region26: #{tpu_custom_call.1} parent=5 // pred_check_branch
        %206 = sbr.rel (%p204) target = $region28
      $region27: #{tpu_custom_call.1} parent=5 // pred_region
        // Predicated region
        $region29: #{tpu_custom_call.1} parent=27 // pred_check
          %p207 = pneg %p49
        $region30: #{tpu_custom_call.1} parent=27 // pred_check_branch
          %209 = sbr.rel (%p207) target = $region32
        $region31: #{tpu_custom_call.1} parent=27 // pred_region
          %s210 = sand.u32 %s39, 1
          %s211 = scalar_lea.sflag [#allocation5], %s210
          %s212 = sand.u32 %s39, 1
          %s213 = smul.addr %s212, 8
          %s214 = scalar_lea.vmem [#allocation4], %s213
          %s216 = ssub.s32 128, 128
          %217 = vsyncadd %s211, %s216
          %s218 = smul.addr %s24, 128
          %s219 = scalar_lea.hbm %s0, %s218
          %s221 = sshll.u32 %s214, 4
          %s222 = int_to_ptr.vmem [resolvable:$true] %s221
          %224 = dma.hbm_to_vmem [thread:$0]  %s219, 128, %s222, %s211
        $region32: #{tpu_custom_call.1} parent=27 // pred_fallthru
          _
      $region28: #{tpu_custom_call.1} parent=5 // pred_fallthru
        _
      %p225 = scmp.le.s32.totalorder 1, %s17
      %p226 = scmp.lt.s32.totalorder %s17, 3
      %p227 = pnand %p225, %p226
      %p228 = pneg %p227
      // Predicated region
      $region33: #{tpu_custom_call.1} parent=5 // pred_check
        _
      $region34: #{tpu_custom_call.1} parent=5 // pred_check_branch
        %230 = sbr.rel (%p227) target = $region36
      $region35: #{tpu_custom_call.1} parent=5 // pred_region
        %s231 = ssub.s32 %s17, 1
        %s232 = sand.u32 %s42, 1
        %s233 = scalar_lea.sflag [#allocation5], %s232
        %s234 = sand.u32 %s42, 1
        %s235 = smul.addr %s234, 8
        %s236 = scalar_lea.vmem [#allocation4], %s235
        // Predicated region
        $region37: #{tpu_custom_call.1} parent=35 // pred_check
          %p237 = pneg %p55
        $region38: #{tpu_custom_call.1} parent=35 // pred_check_branch
          %239 = sbr.rel (%p237) target = $region40
        $region39: #{tpu_custom_call.1} parent=35 // pred_region
          %240 = dma.done %s233, 128
        $region40: #{tpu_custom_call.1} parent=35 // pred_fallthru
          _
        // Predicated region
        $region41: #{tpu_custom_call.1} parent=35 // pred_check
          %p241 = pneg %p81
        $region42: #{tpu_custom_call.1} parent=35 // pred_check_branch
          %243 = sbr.rel (%p241) target = $region44
        $region43: #{tpu_custom_call.1} parent=35 // pred_region
          %244 = dma.done [#allocation8], 512
        $region44: #{tpu_custom_call.1} parent=35 // pred_fallthru
          _
        %s245 = sand.u32 %s42, 1
        %s246 = scalar_lea.sflag [#allocation5], %s245
        %s247 = sand.u32 %s42, 1
        %s248 = smul.addr %s247, 8
        %s249 = scalar_lea.vmem [#allocation4], %s248
        %p250 = pneg %p55
        %p251 = pneg %p52
        %p252 = pneg %p81
        %p253 = pneg %p78
        %p254 = scmp.lt.s32.totalorder %s27, 0
        %s255 = scalar_select %p254, %s27, 0
        %s256 = scalar_lea.vmem %s2, %s255
        %p257 = pneg %p107
        %p258 = pneg %p104
        %p259 = scmp.lt.s32.totalorder %s27, 0
        %s260 = scalar_select %p259, %s27, 0
        %s261 = scalar_lea.vmem %s3, %s260
        %p262 = pneg %p133
        %p263 = pneg %p130
        %p264 = pneg %p161
        %p265 = pneg %p158
        %s266 = sand.u32 %s148, 1
        %s267 = scalar_lea.sflag [#allocation6], %s266
        %s268 = sand.u32 %s148, 1
        %s269 = smul.addr %s268, 8
        %s270 = scalar_lea.vmem [#allocation9], %s269
        %p271 = scmp.lt.s32.totalorder %s27, 0
        %s272 = scalar_select %p271, %s27, 0
        %s273 = scalar_lea.vmem %s2, %s272
        %p274 = scmp.lt.s32.totalorder %s27, 0
        %s275 = scalar_select %p274, %s27, 0
        %s276 = scalar_lea.vmem %s3, %s275
        %p277 = scmp.eq.s32.totalorder %s27, 0
        // Predicated region
        $region45: #{tpu_custom_call.1} parent=35 // pred_check
          %p278 = pneg %p277
        $region46: #{tpu_custom_call.1} parent=35 // pred_check_branch
          %280 = sbr.rel (%p278) target = $region48
        $region47: #{tpu_custom_call.1} parent=35 // pred_region
          %v281 = vld [vmem:[%s236] sm:$0xff]
          %vm282 = vcmask 261120
          %v283 = vsel %vm282, %v281, 0.0
          %284 = vadd.xlane.f32.xlu0 %v283
          %v285 = vpop.xlane.xlu0 %284
          %v286 = vmul.f32 %v285, 0.03125
          %v287 = vsub.f32 %v281, %v286
          %v288 = vmul.f32 %v287, %v287
          %v289 = vsel %vm282, %v288, 0.0
          %290 = vadd.xlane.f32.xlu0 %v289
          %v291 = vpop.xlane.xlu0 %290
          %v292 = vmul.f32 %v291, 0.03125
          %vm293 = vcmask 7168
          %294 = vst.msk [vmem:[#allocation2] sm:$0xff] %vm293, %v286
          %v295 = vadd.f32 %v292, 1e-05
          %v296 = vrsqrt.pop %v295
          %297 = vst.msk [vmem:[#allocation3] sm:$0xff] %vm293, %v296
        $region48: #{tpu_custom_call.1} parent=35 // pred_fallthru
          _
        %v298 = vld [vmem:[%s236] sm:$0xff]
        %v299 = vld [vmem:[#allocation7] sm:$0xff]
        %v300 = vld [vmem:[#allocation7 + $0x8] sm:$0xff]
        %v301 = vld [vmem:[#allocation7 + $0x10] sm:$0xff]
        %v302 = vld [vmem:[#allocation7 + $0x18] sm:$0xff]
        %vm303 = vcmask 261120
        %v305 = vsel %vm303, %v298, 0
        %307 = vmatprep.subr.mxu0 0.0
        %308 = vmatpush1.msra.mxu0 0.0
        %309 = vmatprep.subr.mxu0 0.0
        %310 = vmatpush1.msra.mxu0 0.0
        %311 = vmatprep.subr.mxu0 0.0
        %312 = vmatpush1.msra.mxu0 0.0
        %313 = vmatprep.subr.mxu0 0.0
        %314 = vmatpush1.msra.mxu0 0.0
        %315 = vmatprep.subr.mxu0 0.0
        %316 = vmatpush1.msra.mxu0 0.0
        %317 = vmatprep.subr.mxu0 0.0
        %318 = vmatpush1.msra.mxu0 0.0
        %319 = vmatprep.subr.mxu0 0.0
        %320 = vmatpush1.msra.mxu0 0.0
        %321 = vmatprep.subr.mxu0 0.0
        %322 = vmatpush1.msra.mxu0 0.0
        %323 = vmatprep.subr.mxu0 0.0
        %324 = vmatpush1.msra.mxu0 0.0
        %325 = vmatprep.subr.mxu0 0.0
        %326 = vmatpush1.msra.mxu0 0.0
        %327 = vmatprep.subr.mxu0 0.0
        %328 = vmatpush1.msra.mxu0 0.0
        %329 = vmatprep.subr.mxu0 0.0
        %330 = vmatpush1.msra.mxu0 0.0
        %331 = vmatprep.subr.mxu0 0.0
        %332 = vmatpush1.msra.mxu0 %v302
        %333 = vmatprep.subr.mxu0 0.0
        %334 = vmatpush1.msra.mxu0 %v301
        %335 = vmatprep.subr.mxu0 0.0
        %336 = vmatpush1.msra.mxu0 %v300
        %337 = vmatprep.subr.mxu0 0.0
        %338 = vmatpush1.msra.mxu0 %v299
        %339 = vmatprep.subr.mxu0 0.0
        %340 = vmatpush2.msra.mxu0 0.0
        %341 = vmatprep.subr.mxu0 0.0
        %342 = vmatpush2.msra.mxu0 0.0
        %343 = vmatprep.subr.mxu0 0.0
        %344 = vmatpush2.msra.mxu0 0.0
        %345 = vmatprep.subr.mxu0 0.0
        %346 = vmatpush2.msra.mxu0 0.0
        %347 = vmatprep.subr.mxu0 0.0
        %348 = vmatpush2.msra.mxu0 0.0
        %349 = vmatprep.subr.mxu0 0.0
        %350 = vmatpush2.msra.mxu0 0.0
        %351 = vmatprep.subr.mxu0 0.0
        %352 = vmatpush2.msra.mxu0 0.0
        %353 = vmatprep.subr.mxu0 0.0
        %354 = vmatpush2.msra.mxu0 0.0
        %355 = vmatprep.subr.mxu0 0.0
        %356 = vmatpush2.msra.mxu0 0.0
        %357 = vmatprep.subr.mxu0 0.0
        %358 = vmatpush2.msra.mxu0 0.0
        %359 = vmatprep.subr.mxu0 0.0
        %360 = vmatpush2.msra.mxu0 0.0
        %361 = vmatprep.subr.mxu0 0.0
        %362 = vmatpush2.msra.mxu0 0.0
        %363 = vmatprep.subr.mxu0 0.0
        %364 = vmatpush2.msra.mxu0 0.0
        %365 = vmatprep.subr.mxu0 0.0
        %366 = vmatpush2.msra.mxu0 0.0
        %367 = vmatprep.subr.mxu0 0.0
        %368 = vmatpush2.msra.mxu0 0.0
        %369 = vmatprep.subr.mxu0 0.0
        %370 = vmatpush2.msra.mxu0 0.0
        %371 = vmatprep.mubr.f32.mxu0 0.0
        %372 = vmatmul.mubr.f32.gmra.mxu0 %v305
        %v373 = vpop.f32.mrf.mxu0
        %v374 = vadd.f32 0.0, %v373
        %v375 = vpop.f32.mrf.mxu0
        %376 = vdwg.mxu0
        %v377 = vld [vmem:[#allocation3] sm:$0xff]
        %v378 = vld [vmem:[#allocation2] sm:$0xff]
        %v379 = vmul.f32 %v377, %v378
        %381 = vset.pattern.permute.xlu0 0
        %382 = vperm.xlu0 %381, %v377
        %v383 = vpop.permute.xlu0 %382
        %v385 = vmul.f32 %v383, %v374
        %v386 = vld [vmem:[%s273] sm:$0x1]
        %388 = vset.pattern.permute.xlu0 0
        %389 = vperm.xlu0 %388, %v379
        %v390 = vpop.permute.xlu0 %389
        %v393 = vlaneseq
        %v394 = vshrl.u32 %v393, 7
        %v395 = vsub.s32 0, %v394
        %v396 = vrot.slane %v386, %v395
        %v398 = vmul.f32 %v390, %v396
        %v399 = vsub.f32 %v385, %v398
        %v400 = vld [vmem:[%s276] sm:$0x1]
        %v402 = vlaneseq
        %v403 = vshrl.u32 %v402, 7
        %v404 = vsub.s32 0, %v403
        %v405 = vrot.slane %v400, %v404
        %v407 = vadd.f32 %v399, %v405
        %408 = vst.msk [vmem:[%s270] sm:$0xff] %vm303, %v407
        %s409 = sand.u32 %s148, 1
        %s410 = scalar_lea.sflag [#allocation6], %s409
        %s411 = sand.u32 %s148, 1
        %s412 = smul.addr %s411, 8
        %s413 = scalar_lea.vmem [#allocation9], %s412
        // Predicated region
        $region49: #{tpu_custom_call.1} parent=35 // pred_check
          %p414 = pneg %p158
        $region50: #{tpu_custom_call.1} parent=35 // pred_check_branch
          %416 = sbr.rel (%p414) target = $region52
        $region51: #{tpu_custom_call.1} parent=35 // pred_region
          %s418 = ssub.s32 128, 128
          %419 = vsyncadd %s410, %s418
          %s420 = sadd.s32 %s27, %s26
          %s421 = smul.addr %s420, 128
          %s422 = scalar_lea.hbm %s4, %s421
          %s424 = sshll.u32 %s413, 4
          %s425 = int_to_ptr.vmem [resolvable:$true] %s424
          %427 = dma.vmem_to_hbm [thread:$0]  %s425, 128, %s422, %s410
        $region52: #{tpu_custom_call.1} parent=35 // pred_fallthru
          _
      $region36: #{tpu_custom_call.1} parent=5 // pred_fallthru
        _
      %p428 = scmp.le.s32.totalorder 2, %s17
      // Predicated region
      $region53: #{tpu_custom_call.1} parent=5 // pred_check
        %p429 = pneg %p428
      $region54: #{tpu_custom_call.1} parent=5 // pred_check_branch
        %431 = sbr.rel (%p429) target = $region56
      $region55: #{tpu_custom_call.1} parent=5 // pred_region
        %s432 = ssub.s32 %s17, 2
        // Predicated region
        $region57: #{tpu_custom_call.1} parent=55 // pred_check
          %p433 = pneg %p164
        $region58: #{tpu_custom_call.1} parent=55 // pred_check_branch
          %435 = sbr.rel (%p433) target = $region60
        $region59: #{tpu_custom_call.1} parent=55 // pred_region
          %s436 = sand.u32 %s149, 1
          %s437 = scalar_lea.sflag [#allocation6], %s436
          %s438 = sand.u32 %s149, 1
          %s439 = smul.addr %s438, 8
          %s440 = scalar_lea.vmem [#allocation9], %s439
          %441 = dma.done %s437, 128
        $region60: #{tpu_custom_call.1} parent=55 // pred_fallthru
          _
      $region56: #{tpu_custom_call.1} parent=5 // pred_fallthru
        _
    $region6: #{tpu_custom_call.1} parent=1 // loop_footer
      %s21 = sadd.s32 1, %s17
    $region7: #{tpu_custom_call.1} parent=1 // loop_footer_branch
      %16 = sbr.rel target = $region3
    $region8: #{tpu_custom_call.1} parent=1 // loop_exit
      _
    %442 = vsyncpa [#allocation5], 1
    %s443 = scalar_lea.sflag [#allocation5], 1
    %444 = vsyncpa %s443, 1
    %445 = vsyncpa [#allocation8], 1
    %446 = vsyncpa [#allocation6], 1
    %s447 = scalar_lea.sflag [#allocation6], 1
    %448 = vsyncpa %s447, 1

</llo_original>
